<compile_context>
chip_gen: v5e
topology: v5e:2x2
jax: 0.10.0
libtpu: 0.0.40
codegen_flags: <defaults>
</compile_context>

<pallas_src>
import jax
import jax.numpy as jnp
from jax.experimental import pallas as pl
from jax.experimental.pallas import tpu as pltpu


TM = 128  # node-row tile (multiple of 16 keeps bf16 sublane tiling native)


# ----------------------------------------------------------------------------
# Pallas kernel: one SAGEConv layer + ReLU for a tile of TM node rows.
# ----------------------------------------------------------------------------
def _sage_layer_kernel(a_ref, x_ref, w_ref, b_ref, o_ref):
    """
    a_ref: (TM, Np) bf16   row-normalized adjacency rows for this tile
    x_ref: (Np, F)  bf16   full input features (grid-invariant, VMEM resident)
    w_ref: (2F, C)  bf16   stacked [W_l ; W_r]
    b_ref: (1, C)   f32    lin_l bias
    o_ref: (TM, C)  bf16   relu(lin_l(mean_agg) + lin_r(x)) for this row tile
    """
    tm = o_ref.shape[0]

    # mean aggregation for this row tile: (TM, Np) @ (Np, F), f32 accumulation
    agg = jnp.dot(a_ref[...], x_ref[...], preferred_element_type=jnp.float32)

    # root features for the same rows: aligned dynamic slice of the resident x
    row0 = pl.multiple_of(pl.program_id(0) * tm, tm)
    x_rows = x_ref[pl.ds(row0, tm), :]

    # fused lin_l/lin_r: [agg | x] @ [W_l ; W_r] -> single MXU pass with K = 2F
    cat = jnp.concatenate(
        [agg, x_rows.astype(jnp.float32)], axis=-1).astype(jnp.bfloat16)
    h = jnp.dot(cat, w_ref[...], preferred_element_type=jnp.float32) + b_ref[...]

    o_ref[...] = jnp.maximum(h, 0.0).astype(o_ref.dtype)


def _sage_layer(a_bf16, x_bf16, w_bf16, b_f32):
    """Row-tiled pallas_call for one SAGEConv(+ReLU) hop."""
    np_ = a_bf16.shape[0]
    f = x_bf16.shape[1]
    c = w_bf16.shape[1]
    return pl.pallas_call(
        _sage_layer_kernel,
        out_shape=jax.ShapeDtypeStruct((np_, c), jnp.bfloat16),
        grid=(np_ // TM,),
        in_specs=[
            pl.BlockSpec((TM, np_), lambda i: (i, 0)),    # A row tile
            pl.BlockSpec((np_, f), lambda i: (0, 0)),     # full x (resident)
            pl.BlockSpec((2 * f, c), lambda i: (0, 0)),   # stacked [W_l ; W_r]
            pl.BlockSpec((1, c), lambda i: (0, 0)),       # bias
        ],
        out_specs=pl.BlockSpec((TM, c), lambda i: (i, 0)),
        compiler_params=pltpu.CompilerParams(
            # independent row tiles -> shard across the 2 TensorCores on v7x
            dimension_semantics=("parallel",),
            # safe on all generations; raise and re-derive TM per chip
            # (larger tiles on v5e/v6e, ~half on v7x's 64 MiB VMEM) as N grows
            vmem_limit_bytes=32 * 1024 * 1024,
        ),
    )(a_bf16, x_bf16, w_bf16, b_f32)


# ----------------------------------------------------------------------------
# Forward wrapper: adjacency construction, padding, weight stacking, final Lin.
# ----------------------------------------------------------------------------
def fae_sageconv_forward(x, edge_index, params):
    """x: (N, F_in) float32; edge_index: (2, E) int32 (row 0 = src, row 1 = dst)."""
    (wl1, wr1, b1, wl2, wr2, b2, wlin, blin) = params
    N = x.shape[0]

    # ---- glue (plain JAX): dense row-normalized mean-aggregation operator ----
    # TODO(synk): for large sparse graphs replace the dense (N,N) adjacency with
    # a CSR scalar-prefetch gather kernel (PrefetchScalarGridSpec) — dense A is
    # O(N^2) bytes and this scatter-add is XLA-side work outside the kernel.
    src, dst = edge_index[0], edge_index[1]
    adj = jnp.zeros((N, N), jnp.float32).at[dst, src].add(1.0)   # messages j -> i
    a_mean = adj / jnp.maximum(adj.sum(axis=1, keepdims=True), 1.0)

    # pad the node count to a multiple of TM (zero rows/cols are inert: padded
    # rows never contribute to real rows and are sliced off at the end)
    n_pad = (-N) % TM
    np_ = N + n_pad
    a_mean = jnp.pad(a_mean, ((0, n_pad), (0, n_pad)))
    x_p = jnp.pad(x, ((0, n_pad), (0, 0)))

    # bf16 MXU operands (f32 accumulation in-kernel); stack lin_l/lin_r on K
    a_bf = a_mean.astype(jnp.bfloat16)
    x_bf = x_p.astype(jnp.bfloat16)
    w1 = jnp.concatenate([wl1, wr1], axis=0).astype(jnp.bfloat16)   # (2*F_in, 64)
    w2 = jnp.concatenate([wl2, wr2], axis=0).astype(jnp.bfloat16)   # (128, 32)

    h1 = _sage_layer(a_bf, x_bf, w1, b1)   # (Np, 64) bf16
    h2 = _sage_layer(a_bf, h1, w2, b2)     # (Np, 32) bf16

    # final 32 -> 1 Linear in plain JAX: negligible work, and keeping it out of
    # the kernel keeps the kernel output lane-dense (no 1-lane masked stores).
    out = h2[:N].astype(jnp.float32) @ wlin + blin                  # (N, 1)
    return out


# ----------------------------------------------------------------------------
# Deterministic parameter construction (weights stored pre-transposed (in,out)).
# ----------------------------------------------------------------------------
def make_params(key, in_channels):
    ks = jax.random.split(key, 8)
    def w(k, shape, scale=0.1):
        return (scale * jax.random.normal(k, shape)).astype(jnp.float32)
    wl1 = w(ks[0], (in_channels, 64))   # conv1.lin_l weight (transposed)
    wr1 = w(ks[1], (in_channels, 64))   # conv1.lin_r weight (transposed)
    b1  = w(ks[2], (1, 64))             # conv1.lin_l bias
    wl2 = w(ks[3], (64, 32))            # conv2.lin_l
    wr2 = w(ks[4], (64, 32))            # conv2.lin_r
    b2  = w(ks[5], (1, 32))             # conv2.lin_l bias
    wlin = w(ks[6], (32, 1))            # final Linear
    blin = w(ks[7], (1, 1))
    return (wl1, wr1, b1, wl2, wr2, b2, wlin, blin)


def reference_forward(x, edge_index, params):
    """Pure-JAX f32 reference of the same math (for a sanity check)."""
    N = x.shape[0]
    src, dst = edge_index[0], edge_index[1]
    adj = jnp.zeros((N, N), jnp.float32).at[dst, src].add(1.0)
    a_mean = adj / jnp.maximum(adj.sum(axis=1, keepdims=True), 1.0)
    (wl1, wr1, b1, wl2, wr2, b2, wlin, blin) = params
    h1 = jnp.maximum(a_mean @ x @ wl1 + b1 + x @ wr1, 0.0)
    h2 = jnp.maximum(a_mean @ h1 @ wl2 + b2 + h1 @ wr2, 0.0)
    return h2 @ wlin + blin


if __name__ == "__main__":
    key = jax.random.PRNGKey(0)
    k_x, k_e, k_p = jax.random.split(key, 3)

    N = 256           # number of graph nodes (2 row tiles -> exercises the grid)
    F_in = 8          # in_channels
    E = 1024          # number of directed edges

    x = jax.random.normal(k_x, (N, F_in), dtype=jnp.float32)
    edge_index = jax.random.randint(k_e, (2, E), 0, N, dtype=jnp.int32)
    params = make_params(k_p, F_in)

    out = jax.block_until_ready(fae_sageconv_forward(x, edge_index, params))
    ref = reference_forward(x, edge_index, params)

    assert out.shape == (N, 1)
    # bf16 MXU operands with f32 accumulation -> ~1e-2 relative tolerance
    assert jnp.allclose(out, ref, atol=2e-2, rtol=2e-2), "mismatch vs f32 reference"

    print("KERNEL_OK")
</pallas_src>

<mosaic_0001>
module attributes {stable_mosaic.version = 11 : i64} {
  func.func @_sage_layer_kernel(%arg0: i32, %arg1: memref<128x256xbf16, #tpu.memory_space<vmem>>, %arg2: memref<256x8xbf16, #tpu.memory_space<vmem>>, %arg3: memref<16x64xbf16, #tpu.memory_space<vmem>>, %arg4: memref<1x64xf32, #tpu.memory_space<vmem>>, %arg5: memref<128x64xbf16, #tpu.memory_space<vmem>>) attributes {dimension_semantics = [#tpu.dimension_semantics<parallel>], iteration_bounds = array<i64: 2>, scalar_prefetch = 0 : i64, scratch_operands = 0 : i64, tpu.core_type = #tpu.core_type<tc>, window_params = [{transform_indices = @transform_0, window_bounds = array<i64: 128, 256>}, {pipeline_mode = #tpu.pipeline_mode<synchronous>, transform_indices = @transform_1, window_bounds = array<i64: 256, 8>}, {pipeline_mode = #tpu.pipeline_mode<synchronous>, transform_indices = @transform_2, window_bounds = array<i64: 16, 64>}, {pipeline_mode = #tpu.pipeline_mode<synchronous>, transform_indices = @transform_3, window_bounds = array<i64: 1, 64>}, {transform_indices = @transform_4, window_bounds = array<i64: 128, 64>}]} {
    %c0 = arith.constant 0 : index
    %c0_0 = arith.constant 0 : index
    %0 = vector.load %arg1[%c0, %c0_0] : memref<128x256xbf16, #tpu.memory_space<vmem>>, vector<128x256xbf16>
    %c0_1 = arith.constant 0 : index
    %c0_2 = arith.constant 0 : index
    %1 = vector.load %arg2[%c0_1, %c0_2] : memref<256x8xbf16, #tpu.memory_space<vmem>>, vector<256x8xbf16>
    %cst = arith.constant dense<0.000000e+00> : vector<128x8xf32>
    %2 = tpu.matmul %0, %1, %cst {dimension_numbers = #tpu.dot_dimension_numbers<[1], [0], [0], [1], [0, 0, 1, 1], [], []>} : vector<128x256xbf16>, vector<256x8xbf16>, vector<128x8xf32> -> vector<128x8xf32>
    %c128_i32 = arith.constant 128 : i32
    %3 = arith.muli %arg0, %c128_i32 : i32
    %4 = tpu.assume_multiple %3, 128 : i32
    %5 = arith.index_cast %4 : i32 to index
    %c0_3 = arith.constant 0 : index
    %6 = vector.load %arg2[%5, %c0_3] : memref<256x8xbf16, #tpu.memory_space<vmem>>, vector<128x8xbf16>
    %7 = arith.extf %6 : vector<128x8xbf16> to vector<128x8xf32>
    %8 = tpu.concatenate %2, %7 in 1 : vector<128x8xf32>, vector<128x8xf32> -> vector<128x16xf32>
    %9 = arith.truncf %8 : vector<128x16xf32> to vector<128x16xbf16>
    %c0_4 = arith.constant 0 : index
    %c0_5 = arith.constant 0 : index
    %10 = vector.load %arg3[%c0_4, %c0_5] : memref<16x64xbf16, #tpu.memory_space<vmem>>, vector<16x64xbf16>
    %cst_6 = arith.constant dense<0.000000e+00> : vector<128x64xf32>
    %11 = tpu.matmul %9, %10, %cst_6 {dimension_numbers = #tpu.dot_dimension_numbers<[1], [0], [0], [1], [0, 0, 1, 1], [], []>} : vector<128x16xbf16>, vector<16x64xbf16>, vector<128x64xf32> -> vector<128x64xf32>
    %c0_7 = arith.constant 0 : index
    %c0_8 = arith.constant 0 : index
    %12 = vector.load %arg4[%c0_7, %c0_8] : memref<1x64xf32, #tpu.memory_space<vmem>>, vector<1x64xf32>
    %13 = vector.broadcast %12 : vector<1x64xf32> to vector<128x64xf32>
    %14 = arith.addf %11, %13 : vector<128x64xf32>
    %cst_9 = arith.constant 0.000000e+00 : f32
    %15 = vector.broadcast %cst_9 : f32 to vector<128x64xf32>
    %16 = arith.maximumf %14, %15 : vector<128x64xf32>
    %17 = arith.truncf %16 : vector<128x64xf32> to vector<128x64xbf16>
    %c0_10 = arith.constant 0 : index
    %c0_11 = arith.constant 0 : index
    %18 = vector.load %arg5[%c0_10, %c0_11] : memref<128x64xbf16, #tpu.memory_space<vmem>>, vector<128x64xbf16>
    tpu.vector_store %arg5[%c0_10, %c0_11], %17 {strides = array<i32>} : memref<128x64xbf16, #tpu.memory_space<vmem>>, vector<128x64xbf16>,
    return
  }
  func.func @transform_0(%arg0: i32) -> (i32, i32) {
    %c0_i32 = arith.constant 0 : i32
    %c0_i32_0 = arith.constant 0 : i32
    return %arg0, %c0_i32 : i32, i32
  }
  func.func @transform_1(%arg0: i32) -> (i32, i32) {
    %c0_i32 = arith.constant 0 : i32
    %c0_i32_0 = arith.constant 0 : i32
    %c0_i32_1 = arith.constant 0 : i32
    return %c0_i32, %c0_i32_0 : i32, i32
  }
  func.func @transform_2(%arg0: i32) -> (i32, i32) {
    %c0_i32 = arith.constant 0 : i32
    %c0_i32_0 = arith.constant 0 : i32
    %c0_i32_1 = arith.constant 0 : i32
    return %c0_i32, %c0_i32_0 : i32, i32
  }
  func.func @transform_3(%arg0: i32) -> (i32, i32) {
    %c0_i32 = arith.constant 0 : i32
    %c0_i32_0 = arith.constant 0 : i32
    %c0_i32_1 = arith.constant 0 : i32
    return %c0_i32, %c0_i32_0 : i32, i32
  }
  func.func @transform_4(%arg0: i32) -> (i32, i32) {
    %c0_i32 = arith.constant 0 : i32
    %c0_i32_0 = arith.constant 0 : i32
    return %arg0, %c0_i32 : i32, i32
  }
}

</mosaic_0001>

<llo_original>
// kernel: tpu_custom_call.1
$region0: #{tpu_custom_call.1}
  #allocation0 [shape = 'u32[]', space=smem, size = 0x4, offset = 0x4, fixed_abs, tag = 'smem constant byte address 0x4 - core index']
  #allocation1 [shape = 'u32[72,128]{1,0:T(1,128)}', space=vmem, size = 0x9000, scoped, tag = 'internal scratch']
  %s0 = inlined_call_operand.hbm [shape: bf16[256,256], index: 0, kind: input, shape index: {}]
  %s1 = inlined_call_operand.vmem [shape: bf16[256,8], index: 1, kind: input, shape index: {}]
  %s2 = inlined_call_operand.vmem [shape: bf16[16,64], index: 2, kind: input, shape index: {}]
  %s3 = inlined_call_operand.vmem [shape: f32[1,64], index: 3, kind: input, shape index: {}]
  %s4 = inlined_call_operand.vmem [shape: bf16[256,64], index: 4, kind: output, shape index: {}]
  %s5 = sld [smem:[#allocation0]]
  $region53: #{tpu_custom_call.1} parent=0
    _
  %s7 = ssub.s32 1, %s5
  %s8 = scalar_select 0, %s7, %s5
  $region1: #{tpu_custom_call.1} parent=0
    #allocation2 [shape = 'u8[131072]{0}', space=vmem, size = 0x20000, scoped, tag = 'input window, operand 0']
    #allocation3 [shape = 's32[2]{0}', space=sflag, size = 0x8, scoped, tag = 'scoped memory for tpu_custom_call.1']
    %9 = vsyncpa [#allocation3], 0
    %s10 = scalar_lea.sflag [#allocation3], 1
    %11 = vsyncpa %s10, 0
    loop: start=0, step=1, limit=4
    $region2: #{tpu_custom_call.1} parent=1 // loop_pre_header
      _
    $region3: #{tpu_custom_call.1} parent=1 // loop_header
      %s13 = sphi 0, %s17
      %p14 = scmp.ge.s32.totalorder %s13, 4
      %s23 = sphi 0, %s25
      %s26 = sphi 0, %s23
      %s27 = sphi 0, %s26
      %s43 = sphi 0, %s27
      %s47 = sphi 0, %s47
      %s49 = sphi 0, %s47
      %s50 = sphi 0, %s49
      %s64 = sphi 0, %s50
      %s68 = sphi 0, %s68
      %s70 = sphi 0, %s68
      %s71 = sphi 0, %s70
      %s85 = sphi 0, %s71
      %s89 = sphi 0, %s89
      %s91 = sphi 0, %s89
      %s92 = sphi 0, %s91
      %s106 = sphi 0, %s92
      %s112 = sphi 0, %s114
      %s115 = sphi 0, %s112
      %s116 = sphi 0, %s115
      %s132 = sphi 0, %s116
    $region4: #{tpu_custom_call.1} parent=1 // loop_header_branch
      %16 = sbr.rel (%p14) target = $region8
    $region5: #{tpu_custom_call.1} parent=1 // loop_body
      %s18 = ssub.s32 %s13, 1
      %s19 = ssub.s32 %s13, 2
      %s20 = sadd.s32 %s13, 1
      %s21 = ssub.s32 %s13, %s20
      %p22 = scmp.eq.s32.totalorder %s21, 0
      %s24 = sadd.s32 %s23, 1
      %s25 = scalar_select %p22, %s23, %s24
      %p28 = pneg %p22
      %p29 = scmp.eq.s32.totalorder %s13, 1
      %p30 = por %p28, %p29
      %p31 = scmp.ne.s32.totalorder %s23, %s26
      %p32 = scmp.eq.s32.totalorder %s13, 0
      %p33 = por %p31, %p32
      %p34 = scmp.ne.s32.totalorder %s23, %s26
      %p35 = scmp.eq.s32.totalorder %s18, 1
      %p36 = por %p34, %p35
      %p37 = scmp.ne.s32.totalorder %s26, %s27
      %p38 = scmp.eq.s32.totalorder %s18, 0
      %p39 = por %p37, %p38
      %p40 = scmp.ne.s32.totalorder %s26, %s27
      %p41 = scmp.eq.s32.totalorder %s19, 1
      %p42 = por %p40, %p41
      %p44 = scmp.ne.s32.totalorder %s27, %s43
      %p45 = scmp.eq.s32.totalorder %s19, 0
      %p46 = por %p44, %p45
      %s48 = sadd.s32 %s47, 1
      %p51 = scmp.eq.s32.totalorder %s13, 1
      %p52 = scmp.ne.s32.totalorder %s47, %s49
      %p53 = scmp.eq.s32.totalorder %s13, 0
      %p54 = por %p52, %p53
      %p55 = scmp.ne.s32.totalorder %s47, %s49
      %p56 = scmp.eq.s32.totalorder %s18, 1
      %p57 = por %p55, %p56
      %p58 = scmp.ne.s32.totalorder %s49, %s50
      %p59 = scmp.eq.s32.totalorder %s18, 0
      %p60 = por %p58, %p59
      %p61 = scmp.ne.s32.totalorder %s49, %s50
      %p62 = scmp.eq.s32.totalorder %s19, 1
      %p63 = por %p61, %p62
      %p65 = scmp.ne.s32.totalorder %s50, %s64
      %p66 = scmp.eq.s32.totalorder %s19, 0
      %p67 = por %p65, %p66
      %s69 = sadd.s32 %s68, 1
      %p72 = scmp.eq.s32.totalorder %s13, 1
      %p73 = scmp.ne.s32.totalorder %s68, %s70
      %p74 = scmp.eq.s32.totalorder %s13, 0
      %p75 = por %p73, %p74
      %p76 = scmp.ne.s32.totalorder %s68, %s70
      %p77 = scmp.eq.s32.totalorder %s18, 1
      %p78 = por %p76, %p77
      %p79 = scmp.ne.s32.totalorder %s70, %s71
      %p80 = scmp.eq.s32.totalorder %s18, 0
      %p81 = por %p79, %p80
      %p82 = scmp.ne.s32.totalorder %s70, %s71
      %p83 = scmp.eq.s32.totalorder %s19, 1
      %p84 = por %p82, %p83
      %p86 = scmp.ne.s32.totalorder %s71, %s85
      %p87 = scmp.eq.s32.totalorder %s19, 0
      %p88 = por %p86, %p87
      %s90 = sadd.s32 %s89, 1
      %p93 = scmp.eq.s32.totalorder %s13, 1
      %p94 = scmp.ne.s32.totalorder %s89, %s91
      %p95 = scmp.eq.s32.totalorder %s13, 0
      %p96 = por %p94, %p95
      %p97 = scmp.ne.s32.totalorder %s89, %s91
      %p98 = scmp.eq.s32.totalorder %s18, 1
      %p99 = por %p97, %p98
      %p100 = scmp.ne.s32.totalorder %s91, %s92
      %p101 = scmp.eq.s32.totalorder %s18, 0
      %p102 = por %p100, %p101
      %p103 = scmp.ne.s32.totalorder %s91, %s92
      %p104 = scmp.eq.s32.totalorder %s19, 1
      %p105 = por %p103, %p104
      %p107 = scmp.ne.s32.totalorder %s92, %s106
      %p108 = scmp.eq.s32.totalorder %s19, 0
      %p109 = por %p107, %p108
      %s110 = ssub.s32 %s13, %s20
      %p111 = scmp.eq.s32.totalorder %s110, 0
      %s113 = sadd.s32 %s112, 1
      %s114 = scalar_select %p111, %s112, %s113
      %p117 = pneg %p111
      %p118 = scmp.eq.s32.totalorder %s13, 1
      %p119 = por %p117, %p118
      %p120 = scmp.ne.s32.totalorder %s112, %s115
      %p121 = scmp.eq.s32.totalorder %s13, 0
      %p122 = por %p120, %p121
      %p123 = scmp.ne.s32.totalorder %s112, %s115
      %p124 = scmp.eq.s32.totalorder %s18, 1
      %p125 = por %p123, %p124
      %p126 = scmp.ne.s32.totalorder %s115, %s116
      %p127 = scmp.eq.s32.totalorder %s18, 0
      %p128 = por %p126, %p127
      %p129 = scmp.ne.s32.totalorder %s115, %s116
      %p130 = scmp.eq.s32.totalorder %s19, 1
      %p131 = por %p129, %p130
      %p133 = scmp.ne.s32.totalorder %s116, %s132
      %p134 = scmp.eq.s32.totalorder %s19, 0
      %p135 = por %p133, %p134
      %p136 = scmp.le.s32.totalorder 1, %s13
      %p137 = scmp.lt.s32.totalorder %s13, 3
      %p138 = pnand %p136, %p137
      %p139 = pneg %p138
      // Predicated region
      $region9: #{tpu_custom_call.1} parent=5 // pred_check
        _
      $region10: #{tpu_custom_call.1} parent=5 // pred_check_branch
        %141 = sbr.rel (%p138) target = $region12
      $region11: #{tpu_custom_call.1} parent=5 // pred_region
        %s142 = ssub.s32 %s13, 1
        // Predicated region
        $region13: #{tpu_custom_call.1} parent=11 // pred_check
          %p143 = pneg %p60
        $region14: #{tpu_custom_call.1} parent=11 // pred_check_branch
          %145 = sbr.rel (%p143) target = $region16
        $region15: #{tpu_custom_call.1} parent=11 // pred_region
          _
        $region16: #{tpu_custom_call.1} parent=11 // pred_fallthru
          _
        // Predicated region
        $region17: #{tpu_custom_call.1} parent=11 // pred_check
          %p146 = pneg %p81
        $region18: #{tpu_custom_call.1} parent=11 // pred_check_branch
          %148 = sbr.rel (%p146) target = $region20
        $region19: #{tpu_custom_call.1} parent=11 // pred_region
          _
        $region20: #{tpu_custom_call.1} parent=11 // pred_fallthru
          _
        // Predicated region
        $region21: #{tpu_custom_call.1} parent=11 // pred_check
          %p149 = pneg %p102
        $region22: #{tpu_custom_call.1} parent=11 // pred_check_branch
          %151 = sbr.rel (%p149) target = $region24
        $region23: #{tpu_custom_call.1} parent=11 // pred_region
          _
        $region24: #{tpu_custom_call.1} parent=11 // pred_fallthru
          _
      $region12: #{tpu_custom_call.1} parent=5 // pred_fallthru
        _
      %p152 = scmp.lt.s32.totalorder %s13, 2
      // Predicated region
      $region25: #{tpu_custom_call.1} parent=5 // pred_check
        %p153 = pneg %p152
      $region26: #{tpu_custom_call.1} parent=5 // pred_check_branch
        %155 = sbr.rel (%p153) target = $region28
      $region27: #{tpu_custom_call.1} parent=5 // pred_region
        // Predicated region
        $region29: #{tpu_custom_call.1} parent=27 // pred_check
          %p156 = pneg %p33
        $region30: #{tpu_custom_call.1} parent=27 // pred_check_branch
          %158 = sbr.rel (%p156) target = $region32
        $region31: #{tpu_custom_call.1} parent=27 // pred_region
          %s159 = sand.u32 %s23, 1
          %s160 = scalar_lea.sflag [#allocation3], %s159
          %s161 = sand.u32 %s23, 1
          %s162 = smul.addr %s161, 128
          %s163 = scalar_lea.vmem [#allocation2], %s162
          %s164 = smul.u32 16, %s13
          %166 = vsyncadd %s160, 0
          %s167 = smul.addr %s164, 2
          %s168 = smul.addr %s167, 4
          %s169 = scalar_lea.hbm %s0, %s168
          %s170 = sshll.u32 %s169, 4
          %s171 = int_to_ptr.hbm [resolvable:$true] %s170
          %s172 = sshll.u32 %s163, 4
          %s173 = int_to_ptr.vmem [resolvable:$true] %s172
          %178 = dma.hbm_to_vmem [thread:$0]  %s171, 2048, %s173, %s160, 128, 128, 8
        $region32: #{tpu_custom_call.1} parent=27 // pred_fallthru
          _
      $region28: #{tpu_custom_call.1} parent=5 // pred_fallthru
        _
      %p179 = scmp.le.s32.totalorder 1, %s13
      %p180 = scmp.lt.s32.totalorder %s13, 3
      %p181 = pnand %p179, %p180
      %p182 = pneg %p181
      // Predicated region
      $region33: #{tpu_custom_call.1} parent=5 // pred_check
        _
      $region34: #{tpu_custom_call.1} parent=5 // pred_check_branch
        %184 = sbr.rel (%p181) target = $region36
      $region35: #{tpu_custom_call.1} parent=5 // pred_region
        %s185 = ssub.s32 %s13, 1
        %s186 = sand.u32 %s26, 1
        %s187 = scalar_lea.sflag [#allocation3], %s186
        %s188 = sand.u32 %s26, 1
        %s189 = smul.addr %s188, 128
        %s190 = scalar_lea.vmem [#allocation2], %s189
        // Predicated region
        $region37: #{tpu_custom_call.1} parent=35 // pred_check
          %p191 = pneg %p39
        $region38: #{tpu_custom_call.1} parent=35 // pred_check_branch
          %193 = sbr.rel (%p191) target = $region40
        $region39: #{tpu_custom_call.1} parent=35 // pred_region
          %195 = dma.done %s187, 2048
        $region40: #{tpu_custom_call.1} parent=35 // pred_fallthru
          _
        %s196 = sand.u32 %s26, 1
        %s197 = scalar_lea.sflag [#allocation3], %s196
        %s198 = sand.u32 %s26, 1
        %s199 = smul.addr %s198, 128
        %s200 = scalar_lea.vmem [#allocation2], %s199
        %p201 = pneg %p39
        %p202 = pneg %p36
        %p203 = pneg %p60
        %p204 = pneg %p57
        %p205 = pneg %p81
        %p206 = pneg %p78
        %p207 = pneg %p102
        %p208 = pneg %p99
        %p209 = pneg %p128
        %p210 = pneg %p125
        %s211 = smul.u32 16, %s18
        %p212 = scmp.lt.s32.totalorder %s211, 31
        %s213 = scalar_select %p212, %s211, 31
        %s214 = smul.addr %s213, 4
        %s215 = scalar_lea.vmem %s4, %s214
        %s216 = smul.u32 16, %s18
        %s217 = smul.u32 16, %s18
        %p218 = scmp.lt.s32.totalorder %s217, 31
        %s219 = scalar_select %p218, %s217, 31
        %s220 = smul.addr %s219, 4
        %s221 = scalar_lea.vmem %s4, %s220
        %s222 = smul.u32 16, %s18
        %v224 = vld [vmem:[%s190] sm:$0xff]
        %v225 = vld [vmem:[%s190 + $0x8] sm:$0xff]
        %v226 = vld [vmem:[%s190 + $0x10] sm:$0xff]
        %v227 = vld [vmem:[%s190 + $0x18] sm:$0xff]
        %v228 = vld [vmem:[%s190 + $0x20] sm:$0xff]
        %v229 = vld [vmem:[%s190 + $0x28] sm:$0xff]
        %v230 = vld [vmem:[%s190 + $0x30] sm:$0xff]
        %v231 = vld [vmem:[%s190 + $0x38] sm:$0xff]
        %v232 = vld [vmem:[%s190 + $0x40] sm:$0xff]
        %v233 = vld [vmem:[%s190 + $0x48] sm:$0xff]
        %v234 = vld [vmem:[%s190 + $0x50] sm:$0xff]
        %v235 = vld [vmem:[%s190 + $0x58] sm:$0xff]
        %v236 = vld [vmem:[%s190 + $0x60] sm:$0xff]
        %v237 = vld [vmem:[%s190 + $0x68] sm:$0xff]
        %v238 = vld [vmem:[%s190 + $0x70] sm:$0xff]
        %v239 = vld [vmem:[%s190 + $0x78] sm:$0xff]
        %v240 = vld [vmem:[%s1] sm:$0xf]
        %v241 = vld [vmem:[%s1 + $0x4] sm:$0xf]
        %v242 = vld [vmem:[%s1 + $0x8] sm:$0xf]
        %v243 = vld [vmem:[%s1 + $0xc] sm:$0xf]
        %v244 = vld [vmem:[%s1 + $0x10] sm:$0xf]
        %v245 = vld [vmem:[%s1 + $0x14] sm:$0xf]
        %v246 = vld [vmem:[%s1 + $0x18] sm:$0xf]
        %v247 = vld [vmem:[%s1 + $0x1c] sm:$0xf]
        %v248 = vld [vmem:[%s1 + $0x20] sm:$0xf]
        %v249 = vld [vmem:[%s1 + $0x24] sm:$0xf]
        %v250 = vld [vmem:[%s1 + $0x28] sm:$0xf]
        %v251 = vld [vmem:[%s1 + $0x2c] sm:$0xf]
        %v252 = vld [vmem:[%s1 + $0x30] sm:$0xf]
        %v253 = vld [vmem:[%s1 + $0x34] sm:$0xf]
        %v254 = vld [vmem:[%s1 + $0x38] sm:$0xf]
        %v255 = vld [vmem:[%s1 + $0x3c] sm:$0xf]
        %v256 = vld [vmem:[%s1 + $0x40] sm:$0xf]
        %v257 = vld [vmem:[%s1 + $0x44] sm:$0xf]
        %v258 = vld [vmem:[%s1 + $0x48] sm:$0xf]
        %v259 = vld [vmem:[%s1 + $0x4c] sm:$0xf]
        %v260 = vld [vmem:[%s1 + $0x50] sm:$0xf]
        %v261 = vld [vmem:[%s1 + $0x54] sm:$0xf]
        %v262 = vld [vmem:[%s1 + $0x58] sm:$0xf]
        %v263 = vld [vmem:[%s1 + $0x5c] sm:$0xf]
        %v264 = vld [vmem:[%s1 + $0x60] sm:$0xf]
        %v265 = vld [vmem:[%s1 + $0x64] sm:$0xf]
        %v266 = vld [vmem:[%s1 + $0x68] sm:$0xf]
        %v267 = vld [vmem:[%s1 + $0x6c] sm:$0xf]
        %v268 = vld [vmem:[%s1 + $0x70] sm:$0xf]
        %v269 = vld [vmem:[%s1 + $0x74] sm:$0xf]
        %v270 = vld [vmem:[%s1 + $0x78] sm:$0xf]
        %v271 = vld [vmem:[%s1 + $0x7c] sm:$0xf]
        %v288 = vunpack.c.l.b16 %v224
        %v289 = vunpack.c.h.b16 %v224
        %v290 = vunpack.c.l.b16 %v225
        %v291 = vunpack.c.h.b16 %v225
        %v292 = vunpack.c.l.b16 %v226
        %v293 = vunpack.c.h.b16 %v226
        %v294 = vunpack.c.l.b16 %v227
        %v295 = vunpack.c.h.b16 %v227
        %v296 = vunpack.c.l.b16 %v228
        %v297 = vunpack.c.h.b16 %v228
        %v298 = vunpack.c.l.b16 %v229
        %v299 = vunpack.c.h.b16 %v229
        %v300 = vunpack.c.l.b16 %v230
        %v301 = vunpack.c.h.b16 %v230
        %v302 = vunpack.c.l.b16 %v231
        %v303 = vunpack.c.h.b16 %v231
        %v304 = vunpack.c.l.b16 %v232
        %v305 = vunpack.c.h.b16 %v232
        %v306 = vunpack.c.l.b16 %v233
        %v307 = vunpack.c.h.b16 %v233
        %v308 = vunpack.c.l.b16 %v234
        %v309 = vunpack.c.h.b16 %v234
        %v310 = vunpack.c.l.b16 %v235
        %v311 = vunpack.c.h.b16 %v235
        %v312 = vunpack.c.l.b16 %v236
        %v313 = vunpack.c.h.b16 %v236
        %v314 = vunpack.c.l.b16 %v237
        %v315 = vunpack.c.h.b16 %v237
        %v316 = vunpack.c.l.b16 %v238
        %v317 = vunpack.c.h.b16 %v238
        %v318 = vunpack.c.l.b16 %v239
        %v319 = vunpack.c.h.b16 %v239
        %v320 = vpack.c.b16 %v290, %v288
        %v321 = vpack.c.b16 %v291, %v289
        %v322 = vpack.c.b16 %v294, %v292
        %v323 = vpack.c.b16 %v295, %v293
        %v324 = vpack.c.b16 %v298, %v296
        %v325 = vpack.c.b16 %v299, %v297
        %v326 = vpack.c.b16 %v302, %v300
        %v327 = vpack.c.b16 %v303, %v301
        %v328 = vpack.c.b16 %v306, %v304
        %v329 = vpack.c.b16 %v307, %v305
        %v330 = vpack.c.b16 %v310, %v308
        %v331 = vpack.c.b16 %v311, %v309
        %v332 = vpack.c.b16 %v314, %v312
        %v333 = vpack.c.b16 %v315, %v313
        %v334 = vpack.c.b16 %v318, %v316
        %v335 = vpack.c.b16 %v319, %v317
        %v384 = vunpack.c.l.b16 %v240
        %v385 = vunpack.c.l.b16 %v241
        %v386 = vunpack.c.l.b16 %v242
        %v387 = vunpack.c.l.b16 %v243
        %v388 = vunpack.c.l.b16 %v244
        %v389 = vunpack.c.l.b16 %v245
        %v390 = vunpack.c.l.b16 %v246
        %v391 = vunpack.c.l.b16 %v247
        %v392 = vunpack.c.l.b16 %v248
        %v393 = vunpack.c.l.b16 %v249
        %v394 = vunpack.c.l.b16 %v250
        %v395 = vunpack.c.l.b16 %v251
        %v396 = vunpack.c.l.b16 %v252
        %v397 = vunpack.c.l.b16 %v253
        %v398 = vunpack.c.l.b16 %v254
        %v399 = vunpack.c.l.b16 %v255
        %v400 = vunpack.c.l.b16 %v256
        %v401 = vunpack.c.l.b16 %v257
        %v402 = vunpack.c.l.b16 %v258
        %v403 = vunpack.c.l.b16 %v259
        %v404 = vunpack.c.l.b16 %v260
        %v405 = vunpack.c.l.b16 %v261
        %v406 = vunpack.c.l.b16 %v262
        %v407 = vunpack.c.l.b16 %v263
        %v408 = vunpack.c.l.b16 %v264
        %v409 = vunpack.c.l.b16 %v265
        %v410 = vunpack.c.l.b16 %v266
        %v411 = vunpack.c.l.b16 %v267
        %v412 = vunpack.c.l.b16 %v268
        %v413 = vunpack.c.l.b16 %v269
        %v414 = vunpack.c.l.b16 %v270
        %v415 = vunpack.c.l.b16 %v271
        %v416 = vpack.c.b16 %v385, %v384
        %v417 = vpack.c.b16 %v387, %v386
        %v418 = vpack.c.b16 %v389, %v388
        %v419 = vpack.c.b16 %v391, %v390
        %v420 = vpack.c.b16 %v393, %v392
        %v421 = vpack.c.b16 %v395, %v394
        %v422 = vpack.c.b16 %v397, %v396
        %v423 = vpack.c.b16 %v399, %v398
        %v424 = vpack.c.b16 %v401, %v400
        %v425 = vpack.c.b16 %v403, %v402
        %v426 = vpack.c.b16 %v405, %v404
        %v427 = vpack.c.b16 %v407, %v406
        %v428 = vpack.c.b16 %v409, %v408
        %v429 = vpack.c.b16 %v411, %v410
        %v430 = vpack.c.b16 %v413, %v412
        %v431 = vpack.c.b16 %v415, %v414
        %448 = vmatpush.bf16.msra.mxu0 %v423
        %449 = vmatpush.bf16.msra.mxu0 %v422
        %450 = vmatpush.bf16.msra.mxu0 %v421
        %451 = vmatpush.bf16.msra.mxu0 %v420
        %452 = vmatpush.bf16.msra.mxu0 %v419
        %453 = vmatpush.bf16.msra.mxu0 %v418
        %454 = vmatpush.bf16.msra.mxu0 %v417
        %455 = vmatpush.bf16.msra.mxu0 %v416
        %456 = vmatmul.bf16.gmra.mxu0 %v320
        %v457 = vpop.f32.mrf.mxu0
        %v458 = vadd.f32 0.0, %v457
        %v459 = vpop.f32.mrf.mxu0
        %v460 = vadd.f32 0.0, %v459
        %461 = vmatmul.bf16.gmra.mxu0 %v322
        %v462 = vpop.f32.mrf.mxu0
        %v463 = vadd.f32 0.0, %v462
        %v464 = vpop.f32.mrf.mxu0
        %v465 = vadd.f32 0.0, %v464
        %466 = vmatmul.bf16.gmra.mxu0 %v324
        %v467 = vpop.f32.mrf.mxu0
        %v468 = vadd.f32 0.0, %v467
        %v469 = vpop.f32.mrf.mxu0
        %v470 = vadd.f32 0.0, %v469
        %471 = vmatmul.bf16.gmra.mxu0 %v326
        %v472 = vpop.f32.mrf.mxu0
        %v473 = vadd.f32 0.0, %v472
        %v474 = vpop.f32.mrf.mxu0
        %v475 = vadd.f32 0.0, %v474
        %476 = vmatmul.bf16.gmra.mxu0 %v328
        %v477 = vpop.f32.mrf.mxu0
        %v478 = vadd.f32 0.0, %v477
        %v479 = vpop.f32.mrf.mxu0
        %v480 = vadd.f32 0.0, %v479
        %481 = vmatmul.bf16.gmra.mxu0 %v330
        %v482 = vpop.f32.mrf.mxu0
        %v483 = vadd.f32 0.0, %v482
        %v484 = vpop.f32.mrf.mxu0
        %v485 = vadd.f32 0.0, %v484
        %486 = vmatmul.bf16.gmra.mxu0 %v332
        %v487 = vpop.f32.mrf.mxu0
        %v488 = vadd.f32 0.0, %v487
        %v489 = vpop.f32.mrf.mxu0
        %v490 = vadd.f32 0.0, %v489
        %491 = vmatmul.bf16.gmra.mxu0 %v334
        %v492 = vpop.f32.mrf.mxu0
        %v493 = vadd.f32 0.0, %v492
        %v494 = vpop.f32.mrf.mxu0
        %v495 = vadd.f32 0.0, %v494
        %496 = vdwg.mxu0
        %497 = vmatpush.bf16.msra.mxu0 %v431
        %498 = vmatpush.bf16.msra.mxu0 %v430
        %499 = vmatpush.bf16.msra.mxu0 %v429
        %500 = vmatpush.bf16.msra.mxu0 %v428
        %501 = vmatpush.bf16.msra.mxu0 %v427
        %502 = vmatpush.bf16.msra.mxu0 %v426
        %503 = vmatpush.bf16.msra.mxu0 %v425
        %504 = vmatpush.bf16.msra.mxu0 %v424
        %505 = vmatmul.bf16.gmra.mxu0 %v321
        %v506 = vpop.f32.mrf.mxu0
        %v507 = vadd.f32 %v458, %v506
        %v508 = vpop.f32.mrf.mxu0
        %v509 = vadd.f32 %v460, %v508
        %510 = vmatmul.bf16.gmra.mxu0 %v323
        %v511 = vpop.f32.mrf.mxu0
        %v512 = vadd.f32 %v463, %v511
        %v513 = vpop.f32.mrf.mxu0
        %v514 = vadd.f32 %v465, %v513
        %515 = vmatmul.bf16.gmra.mxu0 %v325
        %v516 = vpop.f32.mrf.mxu0
        %v517 = vadd.f32 %v468, %v516
        %v518 = vpop.f32.mrf.mxu0
        %v519 = vadd.f32 %v470, %v518
        %520 = vmatmul.bf16.gmra.mxu0 %v327
        %v521 = vpop.f32.mrf.mxu0
        %v522 = vadd.f32 %v473, %v521
        %v523 = vpop.f32.mrf.mxu0
        %v524 = vadd.f32 %v475, %v523
        %525 = vmatmul.bf16.gmra.mxu0 %v329
        %v526 = vpop.f32.mrf.mxu0
        %v527 = vadd.f32 %v478, %v526
        %v528 = vpop.f32.mrf.mxu0
        %v529 = vadd.f32 %v480, %v528
        %530 = vmatmul.bf16.gmra.mxu0 %v331
        %v531 = vpop.f32.mrf.mxu0
        %v532 = vadd.f32 %v483, %v531
        %v533 = vpop.f32.mrf.mxu0
        %v534 = vadd.f32 %v485, %v533
        %535 = vmatmul.bf16.gmra.mxu0 %v333
        %v536 = vpop.f32.mrf.mxu0
        %v537 = vadd.f32 %v488, %v536
        %v538 = vpop.f32.mrf.mxu0
        %v539 = vadd.f32 %v490, %v538
        %540 = vmatmul.bf16.gmra.mxu0 %v335
        %v541 = vpop.f32.mrf.mxu0
        %v542 = vadd.f32 %v493, %v541
        %v543 = vpop.f32.mrf.mxu0
        %v544 = vadd.f32 %v495, %v543
        %545 = vdwg.mxu0
        %s546 = smul.u32 %s18, 128
        %s547 = sshra.s32 %s546, 3
        %s548 = sand.u32 %s546, 7
        %s549 = smul.addr %s547, 4
        %s550 = scalar_lea.vmem %s1, %s549
        %v551 = vld [vmem:[%s550] sm:$0xf]
        %v552 = vld [vmem:[%s550 + $0x4] sm:$0xf]
        %v553 = vld [vmem:[%s550 + $0x8] sm:$0xf]
        %v554 = vld [vmem:[%s550 + $0xc] sm:$0xf]
        %v555 = vld [vmem:[%s550 + $0x10] sm:$0xf]
        %v556 = vld [vmem:[%s550 + $0x14] sm:$0xf]
        %v557 = vld [vmem:[%s550 + $0x18] sm:$0xf]
        %v558 = vld [vmem:[%s550 + $0x1c] sm:$0xf]
        %v559 = vld [vmem:[%s550 + $0x20] sm:$0xf]
        %v560 = vld [vmem:[%s550 + $0x24] sm:$0xf]
        %v561 = vld [vmem:[%s550 + $0x28] sm:$0xf]
        %v562 = vld [vmem:[%s550 + $0x2c] sm:$0xf]
        %v563 = vld [vmem:[%s550 + $0x30] sm:$0xf]
        %v564 = vld [vmem:[%s550 + $0x34] sm:$0xf]
        %v565 = vld [vmem:[%s550 + $0x38] sm:$0xf]
        %v566 = vld [vmem:[%s550 + $0x3c] sm:$0xf]
        %v567 = vunpack.c.l.bf16 %v551
        %v568 = vunpack.c.l.bf16 %v552
        %v569 = vunpack.c.l.bf16 %v553
        %v570 = vunpack.c.l.bf16 %v554
        %v571 = vunpack.c.l.bf16 %v555
        %v572 = vunpack.c.l.bf16 %v556
        %v573 = vunpack.c.l.bf16 %v557
        %v574 = vunpack.c.l.bf16 %v558
        %v575 = vunpack.c.l.bf16 %v559
        %v576 = vunpack.c.l.bf16 %v560
        %v577 = vunpack.c.l.bf16 %v561
        %v578 = vunpack.c.l.bf16 %v562
        %v579 = vunpack.c.l.bf16 %v563
        %v580 = vunpack.c.l.bf16 %v564
        %v581 = vunpack.c.l.bf16 %v565
        %v582 = vunpack.c.l.bf16 %v566
        %599 = vrot.lane.b32.xlu0 %v567, 8
        %v600 = vpop.permute.xlu0 %599
        %601 = vrot.lane.b32.xlu0 %v568, 8
        %v602 = vpop.permute.xlu0 %601
        %603 = vrot.lane.b32.xlu0 %v569, 8
        %v604 = vpop.permute.xlu0 %603
        %605 = vrot.lane.b32.xlu0 %v570, 8
        %v606 = vpop.permute.xlu0 %605
        %607 = vrot.lane.b32.xlu0 %v571, 8
        %v608 = vpop.permute.xlu0 %607
        %609 = vrot.lane.b32.xlu0 %v572, 8
        %v610 = vpop.permute.xlu0 %609
        %611 = vrot.lane.b32.xlu0 %v573, 8
        %v612 = vpop.permute.xlu0 %611
        %613 = vrot.lane.b32.xlu0 %v574, 8
        %v614 = vpop.permute.xlu0 %613
        %615 = vrot.lane.b32.xlu0 %v575, 8
        %v616 = vpop.permute.xlu0 %615
        %617 = vrot.lane.b32.xlu0 %v576, 8
        %v618 = vpop.permute.xlu0 %617
        %619 = vrot.lane.b32.xlu0 %v577, 8
        %v620 = vpop.permute.xlu0 %619
        %621 = vrot.lane.b32.xlu0 %v578, 8
        %v622 = vpop.permute.xlu0 %621
        %623 = vrot.lane.b32.xlu0 %v579, 8
        %v624 = vpop.permute.xlu0 %623
        %625 = vrot.lane.b32.xlu0 %v580, 8
        %v626 = vpop.permute.xlu0 %625
        %627 = vrot.lane.b32.xlu0 %v581, 8
        %v628 = vpop.permute.xlu0 %627
        %629 = vrot.lane.b32.xlu0 %v582, 8
        %v630 = vpop.permute.xlu0 %629
        %vm647 = vcmask 64512
        %v648 = vsel %vm647, %v507, %v600
        %v649 = vsel %vm647, %v509, %v602
        %v650 = vsel %vm647, %v512, %v604
        %v651 = vsel %vm647, %v514, %v606
        %v652 = vsel %vm647, %v517, %v608
        %v653 = vsel %vm647, %v519, %v610
        %v654 = vsel %vm647, %v522, %v612
        %v655 = vsel %vm647, %v524, %v614
        %v656 = vsel %vm647, %v527, %v616
        %v657 = vsel %vm647, %v529, %v618
        %v658 = vsel %vm647, %v532, %v620
        %v659 = vsel %vm647, %v534, %v622
        %v660 = vsel %vm647, %v537, %v624
        %v661 = vsel %vm647, %v539, %v626
        %v662 = vsel %vm647, %v542, %v628
        %v663 = vsel %vm647, %v544, %v630
        %v664 = vpack.c.bf16 %v649, %v648
        %v665 = vpack.c.bf16 %v651, %v650
        %v666 = vpack.c.bf16 %v653, %v652
        %v667 = vpack.c.bf16 %v655, %v654
        %v668 = vpack.c.bf16 %v657, %v656
        %v669 = vpack.c.bf16 %v659, %v658
        %v670 = vpack.c.bf16 %v661, %v660
        %v671 = vpack.c.bf16 %v663, %v662
        %v672 = vld [vmem:[%s2] sm:$0xf]
        %v673 = vld [vmem:[%s2 + $0x4] sm:$0xf]
        %v674 = vld [vmem:[%s3] sm:$0x1]
        %v676 = vperm.slane %v674, 0
        %v680 = vunpack.c.l.b16 %v672
        %v681 = vunpack.c.l.b16 %v673
        %v682 = vpack.c.b16 %v681, %v680
        %vm684 = vcmask 130048
        %v686 = vsel %vm684, %v664, 0
        %v689 = vsel %vm684, %v665, 0
        %v692 = vsel %vm684, %v666, 0
        %v695 = vsel %vm684, %v667, 0
        %v698 = vsel %vm684, %v668, 0
        %v701 = vsel %vm684, %v669, 0
        %v704 = vsel %vm684, %v670, 0
        %v707 = vsel %vm684, %v671, 0
        %709 = vmatpush.bf16.msra.mxu0 0
        %710 = vmatpush.bf16.msra.mxu0 0
        %711 = vmatpush.bf16.msra.mxu0 0
        %712 = vmatpush.bf16.msra.mxu0 0
        %713 = vmatpush.bf16.msra.mxu0 0
        %714 = vmatpush.bf16.msra.mxu0 0
        %715 = vmatpush.bf16.msra.mxu0 0
        %716 = vmatpush.bf16.msra.mxu0 %v682
        %717 = vmatmul.bf16.gmra.mxu0 %v686
        %v718 = vpop.f32.mrf.mxu0
        %v719 = vadd.f32 %v676, %v718
        %v720 = vpop.f32.mrf.mxu0
        %v721 = vadd.f32 %v676, %v720
        %722 = vmatmul.bf16.gmra.mxu0 %v689
        %v723 = vpop.f32.mrf.mxu0
        %v724 = vadd.f32 %v676, %v723
        %v725 = vpop.f32.mrf.mxu0
        %v726 = vadd.f32 %v676, %v725
        %727 = vmatmul.bf16.gmra.mxu0 %v692
        %v728 = vpop.f32.mrf.mxu0
        %v729 = vadd.f32 %v676, %v728
        %v730 = vpop.f32.mrf.mxu0
        %v731 = vadd.f32 %v676, %v730
        %732 = vmatmul.bf16.gmra.mxu0 %v695
        %v733 = vpop.f32.mrf.mxu0
        %v734 = vadd.f32 %v676, %v733
        %v735 = vpop.f32.mrf.mxu0
        %v736 = vadd.f32 %v676, %v735
        %737 = vmatmul.bf16.gmra.mxu0 %v698
        %v738 = vpop.f32.mrf.mxu0
        %v739 = vadd.f32 %v676, %v738
        %v740 = vpop.f32.mrf.mxu0
        %v741 = vadd.f32 %v676, %v740
        %742 = vmatmul.bf16.gmra.mxu0 %v701
        %v743 = vpop.f32.mrf.mxu0
        %v744 = vadd.f32 %v676, %v743
        %v745 = vpop.f32.mrf.mxu0
        %v746 = vadd.f32 %v676, %v745
        %747 = vmatmul.bf16.gmra.mxu0 %v704
        %v748 = vpop.f32.mrf.mxu0
        %v749 = vadd.f32 %v676, %v748
        %v750 = vpop.f32.mrf.mxu0
        %v751 = vadd.f32 %v676, %v750
        %752 = vmatmul.bf16.gmra.mxu0 %v707
        %v753 = vpop.f32.mrf.mxu0
        %v754 = vadd.f32 %v676, %v753
        %v755 = vpop.f32.mrf.mxu0
        %v756 = vadd.f32 %v676, %v755
        %757 = vdwg.mxu0
        %v758 = vmax.f32 %v719, 0.0
        %v759 = vmax.f32 %v721, 0.0
        %v760 = vmax.f32 %v724, 0.0
        %v761 = vmax.f32 %v726, 0.0
        %v762 = vmax.f32 %v729, 0.0
        %v763 = vmax.f32 %v731, 0.0
        %v764 = vmax.f32 %v734, 0.0
        %v765 = vmax.f32 %v736, 0.0
        %v766 = vmax.f32 %v739, 0.0
        %v767 = vmax.f32 %v741, 0.0
        %v768 = vmax.f32 %v744, 0.0
        %v769 = vmax.f32 %v746, 0.0
        %v770 = vmax.f32 %v749, 0.0
        %v771 = vmax.f32 %v751, 0.0
        %v772 = vmax.f32 %v754, 0.0
        %v773 = vmax.f32 %v756, 0.0
        %v774 = vpack.c.bf16 %v758, %v758
        %v775 = vpack.c.bf16 %v759, %v759
        %v776 = vpack.c.bf16 %v760, %v760
        %v777 = vpack.c.bf16 %v761, %v761
        %v778 = vpack.c.bf16 %v762, %v762
        %v779 = vpack.c.bf16 %v763, %v763
        %v780 = vpack.c.bf16 %v764, %v764
        %v781 = vpack.c.bf16 %v765, %v765
        %v782 = vpack.c.bf16 %v766, %v766
        %v783 = vpack.c.bf16 %v767, %v767
        %v784 = vpack.c.bf16 %v768, %v768
        %v785 = vpack.c.bf16 %v769, %v769
        %v786 = vpack.c.bf16 %v770, %v770
        %v787 = vpack.c.bf16 %v771, %v771
        %v788 = vpack.c.bf16 %v772, %v772
        %v789 = vpack.c.bf16 %v773, %v773
        %vm790 = vcmask 519168
        %791 = vst.msk [vmem:[%s221] sm:$0xf] %vm790, %v774
        %792 = vst.msk [vmem:[%s221 + $0x4] sm:$0xf] %vm790, %v775
        %793 = vst.msk [vmem:[%s221 + $0x8] sm:$0xf] %vm790, %v776
        %794 = vst.msk [vmem:[%s221 + $0xc] sm:$0xf] %vm790, %v777
        %795 = vst.msk [vmem:[%s221 + $0x10] sm:$0xf] %vm790, %v778
        %796 = vst.msk [vmem:[%s221 + $0x14] sm:$0xf] %vm790, %v779
        %797 = vst.msk [vmem:[%s221 + $0x18] sm:$0xf] %vm790, %v780
        %798 = vst.msk [vmem:[%s221 + $0x1c] sm:$0xf] %vm790, %v781
        %799 = vst.msk [vmem:[%s221 + $0x20] sm:$0xf] %vm790, %v782
        %800 = vst.msk [vmem:[%s221 + $0x24] sm:$0xf] %vm790, %v783
        %801 = vst.msk [vmem:[%s221 + $0x28] sm:$0xf] %vm790, %v784
        %802 = vst.msk [vmem:[%s221 + $0x2c] sm:$0xf] %vm790, %v785
        %803 = vst.msk [vmem:[%s221 + $0x30] sm:$0xf] %vm790, %v786
        %804 = vst.msk [vmem:[%s221 + $0x34] sm:$0xf] %vm790, %v787
        %805 = vst.msk [vmem:[%s221 + $0x38] sm:$0xf] %vm790, %v788
        %806 = vst.msk [vmem:[%s221 + $0x3c] sm:$0xf] %vm790, %v789
        %s807 = smul.u32 16, %s18
        %p808 = scmp.lt.s32.totalorder %s807, 31
        %s809 = scalar_select %p808, %s807, 31
        %s810 = smul.addr %s809, 4
        %s811 = scalar_lea.vmem %s4, %s810
        // Predicated region
        $region41: #{tpu_custom_call.1} parent=35 // pred_check
          %p812 = pneg %p125
        $region42: #{tpu_custom_call.1} parent=35 // pred_check_branch
          %814 = sbr.rel (%p812) target = $region44
        $region43: #{tpu_custom_call.1} parent=35 // pred_region
          %s815 = smul.u32 16, %s18
        $region44: #{tpu_custom_call.1} parent=35 // pred_fallthru
          _
      $region36: #{tpu_custom_call.1} parent=5 // pred_fallthru
        _
      %p816 = scmp.le.s32.totalorder 2, %s13
      // Predicated region
      $region45: #{tpu_custom_call.1} parent=5 // pred_check
        %p817 = pneg %p816
      $region46: #{tpu_custom_call.1} parent=5 // pred_check_branch
        %819 = sbr.rel (%p817) target = $region48
      $region47: #{tpu_custom_call.1} parent=5 // pred_region
        %s820 = ssub.s32 %s13, 2
        // Predicated region
        $region49: #{tpu_custom_call.1} parent=47 // pred_check
          %p821 = pneg %p131
        $region50: #{tpu_custom_call.1} parent=47 // pred_check_branch
          %823 = sbr.rel (%p821) target = $region52
        $region51: #{tpu_custom_call.1} parent=47 // pred_region
          %s824 = smul.u32 16, %s19
          %p825 = scmp.lt.s32.totalorder %s824, 31
          %s826 = scalar_select %p825, %s824, 31
          %s827 = smul.addr %s826, 4
          %s828 = scalar_lea.vmem %s4, %s827
        $region52: #{tpu_custom_call.1} parent=47 // pred_fallthru
          _
      $region48: #{tpu_custom_call.1} parent=5 // pred_fallthru
        _
    $region6: #{tpu_custom_call.1} parent=1 // loop_footer
      %s17 = sadd.s32 1, %s13
    $region7: #{tpu_custom_call.1} parent=1 // loop_footer_branch
      %12 = sbr.rel target = $region3
    $region8: #{tpu_custom_call.1} parent=1 // loop_exit
      _
    %829 = vsyncpa [#allocation3], 1
    %s830 = scalar_lea.sflag [#allocation3], 1
    %831 = vsyncpa %s830, 1

</llo_original>
